<compile_context>
chip_gen: v6e
topology: v6e:2x2x1
jax: 0.10.0
libtpu: 0.0.40
codegen_flags: <defaults>
</compile_context>

<pallas_src>
import functools

import jax
import jax.numpy as jnp
from jax.experimental import pallas as pl
from jax.experimental.pallas import tpu as pltpu


def _round_up(x: int, m: int) -> int:
    return ((x + m - 1) // m) * m


def _cdiv(a: int, b: int) -> int:
    return (a + b - 1) // b


def _choose_tile_m(n: int, tile_m: int) -> int:
    """Rows per grid step: multiple of 16, >=2 grid steps when possible, <= tile_m."""
    if n < 8:
        return n                      # block equals full row extent (allowed)
    tm = min(tile_m, _round_up(n, 16))
    if tm >= 32 and _cdiv(n, tm) < 2:
        # Split into (at least) two steps so v7x's second TensorCore gets work.
        tm = max(16, _round_up(_cdiv(n, 2), 16))
    # Never exceed the row extent rounded to the 8-row sublane granule.
    return min(tm, _round_up(n, 8))


def mlp_kernel(h_ref, w1_ref, b1_ref, w2_ref, b2_ref, out_ref):
    # h_ref:  [TM, F]   f32  (row tile of node features; cast to bf16 in-kernel)
    # w1_ref: [F, Hp]   bf16   b1_ref: [1, Hp] f32
    # w2_ref: [Hp, Cp]  bf16   b2_ref: [1, Cp] f32
    # out_ref:[TM, C]   f32   (C = true num_classes; Cp/Hp are zero-padded to 128)
    h = h_ref[...].astype(jnp.bfloat16)                               # VPU cast, hidden under DMA

    # Layer 1: bf16 MXU matmul, f32 accumulation; bias + ReLU in f32 on the VPU.
    z1 = jnp.dot(h, w1_ref[...], preferred_element_type=jnp.float32) + b1_ref[...]
    a1 = jnp.maximum(z1, 0.0)                                         # [TM, Hp] f32

    # Layer 2 (no activation on the last layer).
    z2 = jnp.dot(a1.astype(jnp.bfloat16), w2_ref[...],
                 preferred_element_type=jnp.float32) + b2_ref[...]    # [TM, Cp] f32

    # Store only the valid class lanes; HBM writeback is a contiguous (TM, C) block.
    c = out_ref.shape[-1]
    out_ref[...] = z2[:, :c].astype(out_ref.dtype)


@functools.partial(jax.jit, static_argnames=("tile_m",))
def mlp_forward(h, w1, b1, w2, b2, *, tile_m=1024):
    """Two-layer MLP forward.  h: [N, F] f32; w1: [F, H]; w2: [H, C]."""
    N, F = h.shape
    H = w1.shape[1]
    C = w2.shape[1]

    # Zero-pad hidden / class dims of the (tiny) weights to 128 lanes.
    Hp = _round_up(max(H, 128), 128)
    Cp = _round_up(max(C, 128), 128)
    w1p = jnp.zeros((F, Hp), jnp.bfloat16).at[:, :H].set(w1.astype(jnp.bfloat16))
    b1p = jnp.zeros((1, Hp), jnp.float32).at[:, :H].set(
        b1.reshape(1, -1).astype(jnp.float32))
    w2p = jnp.zeros((Hp, Cp), jnp.bfloat16).at[:H, :C].set(w2.astype(jnp.bfloat16))
    b2p = jnp.zeros((1, Cp), jnp.float32).at[:, :C].set(
        b2.reshape(1, -1).astype(jnp.float32))

    TM = _choose_tile_m(N, tile_m)
    grid = (_cdiv(N, TM),)

    # Real HBM traffic: f32 h in, f32 (N, C) out, tiny bf16 weights.
    flops = 2 * N * (F * Hp + Hp * Cp)
    bytes_accessed = (N * F * 4 + N * C * 4
                      + F * Hp * 2 + Hp * 4 + Hp * Cp * 2 + Cp * 4)

    # Derived VMEM budget: double-buffered streamed tiles + resident weights
    # + f32 intermediates, with 2x headroom; clamp to what v7x (64 MiB) allows.
    tile_vmem = 2 * (TM * F * 4 + TM * C * 4)
    weight_vmem = 2 * (F * Hp * 2 + Hp * 4 + Hp * Cp * 2 + Cp * 4)
    work_vmem = TM * (F * 2 + Hp * 4 + Hp * 2 + Cp * 4)
    vmem_limit = int(min(max(2 * (tile_vmem + weight_vmem + work_vmem),
                             16 * 1024 * 1024),
                         64 * 1024 * 1024))

    out = pl.pallas_call(
        mlp_kernel,
        out_shape=jax.ShapeDtypeStruct((N, C), jnp.float32),
        grid=grid,
        in_specs=[
            pl.BlockSpec((TM, F), lambda i: (i, 0)),     # h: streamed over rows (f32)
            pl.BlockSpec((F, Hp), lambda i: (0, 0)),     # w1: VMEM-resident
            pl.BlockSpec((1, Hp), lambda i: (0, 0)),     # b1: resident
            pl.BlockSpec((Hp, Cp), lambda i: (0, 0)),    # w2: resident
            pl.BlockSpec((1, Cp), lambda i: (0, 0)),     # b2: resident
        ],
        out_specs=pl.BlockSpec((TM, C), lambda i: (i, 0)),
        compiler_params=pltpu.CompilerParams(
            dimension_semantics=("parallel",),           # megacore sharding on v7x
            vmem_limit_bytes=vmem_limit,
        ),
        cost_estimate=pl.CostEstimate(
            flops=flops, transcendentals=0, bytes_accessed=bytes_accessed),
    )(h, w1p, b1p, w2p, b2p)

    return out


def _ref_forward(h, w1, b1, w2, b2):
    # Pure-f32 reference of the two-layer MLP.
    return jnp.maximum(h @ w1 + b1, 0.0) @ w2 + b2


if __name__ == "__main__":
    # Small shapes consistent with the module defaults:
    #   in_feats=64, h_feats=32, num_classes=2, num_layers=2, dropout=0, ReLU.
    N = 200      # number of rows / nodes (deliberately not a tile multiple)
    F = 64       # in_feats
    H = 32       # h_feats
    C = 2        # num_classes

    key = jax.random.PRNGKey(0)
    k_h, k_w1, k_b1, k_w2, k_b2 = jax.random.split(key, 5)

    h = jax.random.normal(k_h, (N, F), dtype=jnp.float32)

    # torch.nn.Linear-style init: uniform(-1/sqrt(fan_in), 1/sqrt(fan_in)).
    w1 = jax.random.uniform(k_w1, (F, H), jnp.float32, -1.0, 1.0) / jnp.sqrt(F)
    b1 = jax.random.uniform(k_b1, (H,), jnp.float32, -1.0, 1.0) / jnp.sqrt(F)
    w2 = jax.random.uniform(k_w2, (H, C), jnp.float32, -1.0, 1.0) / jnp.sqrt(H)
    b2 = jax.random.uniform(k_b2, (C,), jnp.float32, -1.0, 1.0) / jnp.sqrt(H)

    out = mlp_forward(h, w1, b1, w2, b2, tile_m=1024)
    out = jax.block_until_ready(out)

    ref = _ref_forward(h, w1, b1, w2, b2)
    assert out.shape == (N, C), out.shape
    # bf16 matmul operands with f32 accumulation -> ~1e-2-level error vs f32 ref.
    err = float(jnp.abs(out - ref).max())
    assert jnp.allclose(out, ref, atol=3e-2, rtol=3e-2), err

    print("KERNEL_OK")
</pallas_src>

<mosaic_0001>
module attributes {stable_mosaic.version = 11 : i64} {
  func.func @mlp_kernel(%arg0: i32, %arg1: memref<112x64xf32, #tpu.memory_space<vmem>>, %arg2: memref<64x128xbf16, #tpu.memory_space<vmem>>, %arg3: memref<1x128xf32, #tpu.memory_space<vmem>>, %arg4: memref<128x128xbf16, #tpu.memory_space<vmem>>, %arg5: memref<1x128xf32, #tpu.memory_space<vmem>>, %arg6: memref<112x2xf32, #tpu.memory_space<vmem>>) attributes {dimension_semantics = [#tpu.dimension_semantics<parallel>], iteration_bounds = array<i64: 2>, scalar_prefetch = 0 : i64, scratch_operands = 0 : i64, tpu.core_type = #tpu.core_type<tc>, window_params = [{transform_indices = @transform_0, window_bounds = array<i64: 112, 64>}, {pipeline_mode = #tpu.pipeline_mode<synchronous>, transform_indices = @transform_1, window_bounds = array<i64: 64, 128>}, {pipeline_mode = #tpu.pipeline_mode<synchronous>, transform_indices = @transform_2, window_bounds = array<i64: 1, 128>}, {pipeline_mode = #tpu.pipeline_mode<synchronous>, transform_indices = @transform_3, window_bounds = array<i64: 128, 128>}, {pipeline_mode = #tpu.pipeline_mode<synchronous>, transform_indices = @transform_4, window_bounds = array<i64: 1, 128>}, {transform_indices = @transform_5, window_bounds = array<i64: 112, 2>}]} {
    %c0 = arith.constant 0 : index
    %c0_0 = arith.constant 0 : index
    %0 = vector.load %arg1[%c0, %c0_0] : memref<112x64xf32, #tpu.memory_space<vmem>>, vector<112x64xf32>
    %1 = arith.truncf %0 : vector<112x64xf32> to vector<112x64xbf16>
    %c0_1 = arith.constant 0 : index
    %c0_2 = arith.constant 0 : index
    %2 = vector.load %arg2[%c0_1, %c0_2] : memref<64x128xbf16, #tpu.memory_space<vmem>>, vector<64x128xbf16>
    %cst = arith.constant dense<0.000000e+00> : vector<112x128xf32>
    %3 = tpu.matmul %1, %2, %cst {dimension_numbers = #tpu.dot_dimension_numbers<[1], [0], [0], [1], [0, 0, 1, 1], [], []>} : vector<112x64xbf16>, vector<64x128xbf16>, vector<112x128xf32> -> vector<112x128xf32>
    %c0_3 = arith.constant 0 : index
    %c0_4 = arith.constant 0 : index
    %4 = vector.load %arg3[%c0_3, %c0_4] : memref<1x128xf32, #tpu.memory_space<vmem>>, vector<1x128xf32>
    %5 = vector.broadcast %4 : vector<1x128xf32> to vector<112x128xf32>
    %6 = arith.addf %3, %5 : vector<112x128xf32>
    %cst_5 = arith.constant 0.000000e+00 : f32
    %7 = vector.broadcast %cst_5 : f32 to vector<112x128xf32>
    %8 = arith.maximumf %6, %7 : vector<112x128xf32>
    %9 = arith.truncf %8 : vector<112x128xf32> to vector<112x128xbf16>
    %c0_6 = arith.constant 0 : index
    %c0_7 = arith.constant 0 : index
    %10 = vector.load %arg4[%c0_6, %c0_7] : memref<128x128xbf16, #tpu.memory_space<vmem>>, vector<128x128xbf16>
    %cst_8 = arith.constant dense<0.000000e+00> : vector<112x128xf32>
    %11 = tpu.matmul %9, %10, %cst_8 {dimension_numbers = #tpu.dot_dimension_numbers<[1], [0], [0], [1], [0, 0, 1, 1], [], []>} : vector<112x128xbf16>, vector<128x128xbf16>, vector<112x128xf32> -> vector<112x128xf32>
    %c0_9 = arith.constant 0 : index
    %c0_10 = arith.constant 0 : index
    %12 = vector.load %arg5[%c0_9, %c0_10] : memref<1x128xf32, #tpu.memory_space<vmem>>, vector<1x128xf32>
    %13 = vector.broadcast %12 : vector<1x128xf32> to vector<112x128xf32>
    %14 = arith.addf %11, %13 : vector<112x128xf32>
    %15 = vector.extract_strided_slice %14 {offsets = [0, 0], sizes = [112, 2], strides = [1, 1]} : vector<112x128xf32> to vector<112x2xf32>
    %c0_11 = arith.constant 0 : index
    %c0_12 = arith.constant 0 : index
    %16 = vector.load %arg6[%c0_11, %c0_12] : memref<112x2xf32, #tpu.memory_space<vmem>>, vector<112x2xf32>
    tpu.vector_store %arg6[%c0_11, %c0_12], %15 {strides = array<i32>} : memref<112x2xf32, #tpu.memory_space<vmem>>, vector<112x2xf32>,
    return
  }
  func.func @transform_0(%arg0: i32) -> (i32, i32) {
    %c0_i32 = arith.constant 0 : i32
    %c0_i32_0 = arith.constant 0 : i32
    return %arg0, %c0_i32 : i32, i32
  }
  func.func @transform_1(%arg0: i32) -> (i32, i32) {
    %c0_i32 = arith.constant 0 : i32
    %c0_i32_0 = arith.constant 0 : i32
    %c0_i32_1 = arith.constant 0 : i32
    return %c0_i32, %c0_i32_0 : i32, i32
  }
  func.func @transform_2(%arg0: i32) -> (i32, i32) {
    %c0_i32 = arith.constant 0 : i32
    %c0_i32_0 = arith.constant 0 : i32
    %c0_i32_1 = arith.constant 0 : i32
    return %c0_i32, %c0_i32_0 : i32, i32
  }
  func.func @transform_3(%arg0: i32) -> (i32, i32) {
    %c0_i32 = arith.constant 0 : i32
    %c0_i32_0 = arith.constant 0 : i32
    %c0_i32_1 = arith.constant 0 : i32
    return %c0_i32, %c0_i32_0 : i32, i32
  }
  func.func @transform_4(%arg0: i32) -> (i32, i32) {
    %c0_i32 = arith.constant 0 : i32
    %c0_i32_0 = arith.constant 0 : i32
    %c0_i32_1 = arith.constant 0 : i32
    return %c0_i32, %c0_i32_0 : i32, i32
  }
  func.func @transform_5(%arg0: i32) -> (i32, i32) {
    %c0_i32 = arith.constant 0 : i32
    %c0_i32_0 = arith.constant 0 : i32
    return %arg0, %c0_i32 : i32, i32
  }
}

</mosaic_0001>

<llo_original>
// kernel: mlp_forward.1
$region0: #{mlp_forward.1}
  #allocation0 [shape = 'u32[]', space=smem, size = 0x4, offset = 0x4, fixed_abs, tag = 'smem constant byte address 0x4 - core index']
  #allocation1 [shape = 'u32[144,128]{1,0:T(1,128)}', space=vmem, size = 0x12000, scoped, tag = 'internal scratch']
  %s0 = inlined_call_operand.vmem [shape: f32[200,64], index: 0, kind: input, shape index: {}]
  %s1 = inlined_call_operand.vmem [shape: bf16[64,128], index: 1, kind: input, shape index: {}]
  %s2 = inlined_call_operand.vmem [shape: f32[1,128], index: 2, kind: input, shape index: {}]
  %s3 = inlined_call_operand.vmem [shape: bf16[128,128], index: 3, kind: input, shape index: {}]
  %s4 = inlined_call_operand.vmem [shape: f32[1,128], index: 4, kind: input, shape index: {}]
  %s5 = inlined_call_operand.vmem [shape: f32[200,2], index: 5, kind: output, shape index: {}]
  %s6 = sld [smem:[#allocation0]]
  $region101: #{mlp_forward.1} parent=0
    _
  %s8 = ssub.s32 1, %s6
  %s9 = scalar_select 0, %s8, %s6
  $region1: #{mlp_forward.1} parent=0
    #allocation2 [shape = 'u8[114688]{0}', space=vmem, size = 0x1c000, scoped, tag = 'output window, operand 0']
    loop: start=0, step=1, limit=4
    $region2: #{mlp_forward.1} parent=1 // loop_pre_header
      _
    $region3: #{mlp_forward.1} parent=1 // loop_header
      %s11 = sphi 0, %s15
      %p12 = scmp.ge.s32.totalorder %s11, 4
      %s21 = sphi 0, %s23
      %s24 = sphi 0, %s21
      %s25 = sphi 0, %s24
      %s41 = sphi 0, %s25
      %s45 = sphi 0, %s45
      %s47 = sphi 0, %s45
      %s48 = sphi 0, %s47
      %s62 = sphi 0, %s48
      %s66 = sphi 0, %s66
      %s68 = sphi 0, %s66
      %s69 = sphi 0, %s68
      %s83 = sphi 0, %s69
      %s87 = sphi 0, %s87
      %s89 = sphi 0, %s87
      %s90 = sphi 0, %s89
      %s104 = sphi 0, %s90
      %s108 = sphi 0, %s108
      %s110 = sphi 0, %s108
      %s111 = sphi 0, %s110
      %s125 = sphi 0, %s111
      %s131 = sphi 0, %s133
      %s134 = sphi 0, %s131
      %s135 = sphi 0, %s134
      %s151 = sphi 0, %s135
    $region4: #{mlp_forward.1} parent=1 // loop_header_branch
      %14 = sbr.rel (%p12) target = $region8
    $region5: #{mlp_forward.1} parent=1 // loop_body
      %s16 = ssub.s32 %s11, 1
      %s17 = ssub.s32 %s11, 2
      %s18 = sadd.s32 %s11, 1
      %s19 = ssub.s32 %s11, %s18
      %p20 = scmp.eq.s32.totalorder %s19, 0
      %s22 = sadd.s32 %s21, 1
      %s23 = scalar_select %p20, %s21, %s22
      %p26 = pneg %p20
      %p27 = scmp.eq.s32.totalorder %s11, 1
      %p28 = por %p26, %p27
      %p29 = scmp.ne.s32.totalorder %s21, %s24
      %p30 = scmp.eq.s32.totalorder %s11, 0
      %p31 = por %p29, %p30
      %p32 = scmp.ne.s32.totalorder %s21, %s24
      %p33 = scmp.eq.s32.totalorder %s16, 1
      %p34 = por %p32, %p33
      %p35 = scmp.ne.s32.totalorder %s24, %s25
      %p36 = scmp.eq.s32.totalorder %s16, 0
      %p37 = por %p35, %p36
      %p38 = scmp.ne.s32.totalorder %s24, %s25
      %p39 = scmp.eq.s32.totalorder %s17, 1
      %p40 = por %p38, %p39
      %p42 = scmp.ne.s32.totalorder %s25, %s41
      %p43 = scmp.eq.s32.totalorder %s17, 0
      %p44 = por %p42, %p43
      %s46 = sadd.s32 %s45, 1
      %p49 = scmp.eq.s32.totalorder %s11, 1
      %p50 = scmp.ne.s32.totalorder %s45, %s47
      %p51 = scmp.eq.s32.totalorder %s11, 0
      %p52 = por %p50, %p51
      %p53 = scmp.ne.s32.totalorder %s45, %s47
      %p54 = scmp.eq.s32.totalorder %s16, 1
      %p55 = por %p53, %p54
      %p56 = scmp.ne.s32.totalorder %s47, %s48
      %p57 = scmp.eq.s32.totalorder %s16, 0
      %p58 = por %p56, %p57
      %p59 = scmp.ne.s32.totalorder %s47, %s48
      %p60 = scmp.eq.s32.totalorder %s17, 1
      %p61 = por %p59, %p60
      %p63 = scmp.ne.s32.totalorder %s48, %s62
      %p64 = scmp.eq.s32.totalorder %s17, 0
      %p65 = por %p63, %p64
      %s67 = sadd.s32 %s66, 1
      %p70 = scmp.eq.s32.totalorder %s11, 1
      %p71 = scmp.ne.s32.totalorder %s66, %s68
      %p72 = scmp.eq.s32.totalorder %s11, 0
      %p73 = por %p71, %p72
      %p74 = scmp.ne.s32.totalorder %s66, %s68
      %p75 = scmp.eq.s32.totalorder %s16, 1
      %p76 = por %p74, %p75
      %p77 = scmp.ne.s32.totalorder %s68, %s69
      %p78 = scmp.eq.s32.totalorder %s16, 0
      %p79 = por %p77, %p78
      %p80 = scmp.ne.s32.totalorder %s68, %s69
      %p81 = scmp.eq.s32.totalorder %s17, 1
      %p82 = por %p80, %p81
      %p84 = scmp.ne.s32.totalorder %s69, %s83
      %p85 = scmp.eq.s32.totalorder %s17, 0
      %p86 = por %p84, %p85
      %s88 = sadd.s32 %s87, 1
      %p91 = scmp.eq.s32.totalorder %s11, 1
      %p92 = scmp.ne.s32.totalorder %s87, %s89
      %p93 = scmp.eq.s32.totalorder %s11, 0
      %p94 = por %p92, %p93
      %p95 = scmp.ne.s32.totalorder %s87, %s89
      %p96 = scmp.eq.s32.totalorder %s16, 1
      %p97 = por %p95, %p96
      %p98 = scmp.ne.s32.totalorder %s89, %s90
      %p99 = scmp.eq.s32.totalorder %s16, 0
      %p100 = por %p98, %p99
      %p101 = scmp.ne.s32.totalorder %s89, %s90
      %p102 = scmp.eq.s32.totalorder %s17, 1
      %p103 = por %p101, %p102
      %p105 = scmp.ne.s32.totalorder %s90, %s104
      %p106 = scmp.eq.s32.totalorder %s17, 0
      %p107 = por %p105, %p106
      %s109 = sadd.s32 %s108, 1
      %p112 = scmp.eq.s32.totalorder %s11, 1
      %p113 = scmp.ne.s32.totalorder %s108, %s110
      %p114 = scmp.eq.s32.totalorder %s11, 0
      %p115 = por %p113, %p114
      %p116 = scmp.ne.s32.totalorder %s108, %s110
      %p117 = scmp.eq.s32.totalorder %s16, 1
      %p118 = por %p116, %p117
      %p119 = scmp.ne.s32.totalorder %s110, %s111
      %p120 = scmp.eq.s32.totalorder %s16, 0
      %p121 = por %p119, %p120
      %p122 = scmp.ne.s32.totalorder %s110, %s111
      %p123 = scmp.eq.s32.totalorder %s17, 1
      %p124 = por %p122, %p123
      %p126 = scmp.ne.s32.totalorder %s111, %s125
      %p127 = scmp.eq.s32.totalorder %s17, 0
      %p128 = por %p126, %p127
      %s129 = ssub.s32 %s11, %s18
      %p130 = scmp.eq.s32.totalorder %s129, 0
      %s132 = sadd.s32 %s131, 1
      %s133 = scalar_select %p130, %s131, %s132
      %p136 = pneg %p130
      %p137 = scmp.eq.s32.totalorder %s11, 1
      %p138 = por %p136, %p137
      %p139 = scmp.ne.s32.totalorder %s131, %s134
      %p140 = scmp.eq.s32.totalorder %s11, 0
      %p141 = por %p139, %p140
      %p142 = scmp.ne.s32.totalorder %s131, %s134
      %p143 = scmp.eq.s32.totalorder %s16, 1
      %p144 = por %p142, %p143
      %p145 = scmp.ne.s32.totalorder %s134, %s135
      %p146 = scmp.eq.s32.totalorder %s16, 0
      %p147 = por %p145, %p146
      %p148 = scmp.ne.s32.totalorder %s134, %s135
      %p149 = scmp.eq.s32.totalorder %s17, 1
      %p150 = por %p148, %p149
      %p152 = scmp.ne.s32.totalorder %s135, %s151
      %p153 = scmp.eq.s32.totalorder %s17, 0
      %p154 = por %p152, %p153
      %p155 = scmp.le.s32.totalorder 1, %s11
      %p156 = scmp.lt.s32.totalorder %s11, 3
      %p157 = pnand %p155, %p156
      %p158 = pneg %p157
      // Predicated region
      $region9: #{mlp_forward.1} parent=5 // pred_check
        _
      $region10: #{mlp_forward.1} parent=5 // pred_check_branch
        %160 = sbr.rel (%p157) target = $region12
      $region11: #{mlp_forward.1} parent=5 // pred_region
        %s161 = ssub.s32 %s11, 1
        // Predicated region
        $region13: #{mlp_forward.1} parent=11 // pred_check
          %p162 = pneg %p58
        $region14: #{mlp_forward.1} parent=11 // pred_check_branch
          %164 = sbr.rel (%p162) target = $region16
        $region15: #{mlp_forward.1} parent=11 // pred_region
          _
        $region16: #{mlp_forward.1} parent=11 // pred_fallthru
          _
        // Predicated region
        $region17: #{mlp_forward.1} parent=11 // pred_check
          %p165 = pneg %p79
        $region18: #{mlp_forward.1} parent=11 // pred_check_branch
          %167 = sbr.rel (%p165) target = $region20
        $region19: #{mlp_forward.1} parent=11 // pred_region
          _
        $region20: #{mlp_forward.1} parent=11 // pred_fallthru
          _
        // Predicated region
        $region21: #{mlp_forward.1} parent=11 // pred_check
          %p168 = pneg %p100
        $region22: #{mlp_forward.1} parent=11 // pred_check_branch
          %170 = sbr.rel (%p168) target = $region24
        $region23: #{mlp_forward.1} parent=11 // pred_region
          _
        $region24: #{mlp_forward.1} parent=11 // pred_fallthru
          _
        // Predicated region
        $region25: #{mlp_forward.1} parent=11 // pred_check
          %p171 = pneg %p121
        $region26: #{mlp_forward.1} parent=11 // pred_check_branch
          %173 = sbr.rel (%p171) target = $region28
        $region27: #{mlp_forward.1} parent=11 // pred_region
          _
        $region28: #{mlp_forward.1} parent=11 // pred_fallthru
          _
      $region12: #{mlp_forward.1} parent=5 // pred_fallthru
        _
      %p174 = scmp.lt.s32.totalorder %s11, 2
      // Predicated region
      $region29: #{mlp_forward.1} parent=5 // pred_check
        %p175 = pneg %p174
      $region30: #{mlp_forward.1} parent=5 // pred_check_branch
        %177 = sbr.rel (%p175) target = $region32
      $region31: #{mlp_forward.1} parent=5 // pred_region
        // Predicated region
        $region33: #{mlp_forward.1} parent=31 // pred_check
          %p178 = pneg %p31
        $region34: #{mlp_forward.1} parent=31 // pred_check_branch
          %180 = sbr.rel (%p178) target = $region36
        $region35: #{mlp_forward.1} parent=31 // pred_region
          %s181 = smul.u32 14, %s11
          %s182 = ssub.s32 25, %s181
          %p183 = scmp.lt.s32.totalorder %s182, 14
          %s184 = scalar_select %p183, %s182, 14
          %s185 = smul.u32 128, %s184
          %p186 = scmp.lt.s32.totalorder %s181, 24
          %s187 = scalar_select %p186, %s181, 24
          %s188 = smul.addr %s187, 8
          %s189 = scalar_lea.vmem %s0, %s188
          %s190 = smul.u32 14, %s11
          %s191 = ssub.s32 25, %s190
          %p192 = scmp.lt.s32.totalorder %s191, 14
          %s193 = scalar_select %p192, %s191, 14
          %s194 = smul.u32 128, %s193
        $region36: #{mlp_forward.1} parent=31 // pred_fallthru
          _
      $region32: #{mlp_forward.1} parent=5 // pred_fallthru
        _
      %p195 = scmp.le.s32.totalorder 1, %s11
      %p196 = scmp.lt.s32.totalorder %s11, 3
      %p197 = pnand %p195, %p196
      %p198 = pneg %p197
      // Predicated region
      $region37: #{mlp_forward.1} parent=5 // pred_check
        _
      $region38: #{mlp_forward.1} parent=5 // pred_check_branch
        %200 = sbr.rel (%p197) target = $region40
      $region39: #{mlp_forward.1} parent=5 // pred_region
        %s201 = ssub.s32 %s11, 1
        %s202 = smul.u32 14, %s16
        %s203 = ssub.s32 25, %s202
        %p204 = scmp.lt.s32.totalorder %s203, 14
        %s205 = scalar_select %p204, %s203, 14
        %s206 = smul.u32 128, %s205
        %p207 = scmp.lt.s32.totalorder %s202, 24
        %s208 = scalar_select %p207, %s202, 24
        %s209 = smul.addr %s208, 8
        %s210 = scalar_lea.vmem %s0, %s209
        %p211 = pneg %p37
        %p212 = pneg %p34
        %p213 = pneg %p58
        %p214 = pneg %p55
        %p215 = pneg %p79
        %p216 = pneg %p76
        %p217 = pneg %p100
        %p218 = pneg %p97
        %p219 = pneg %p121
        %p220 = pneg %p118
        %p221 = pneg %p147
        %p222 = pneg %p144
        %s223 = sand.u32 %s134, 1
        %s224 = sand.u32 %s134, 1
        %s225 = smul.addr %s224, 112
        %s226 = scalar_lea.vmem [#allocation2], %s225
        %s227 = smul.u32 14, %s16
        %s228 = ssub.s32 25, %s227
        %p229 = scmp.lt.s32.totalorder %s228, 14
        %s230 = scalar_select %p229, %s228, 14
        %s231 = smul.u32 128, %s230
        %p232 = scmp.lt.s32.totalorder %s227, 24
        %s233 = scalar_select %p232, %s227, 24
        %s234 = smul.addr %s233, 8
        %s235 = scalar_lea.vmem %s0, %s234
        %s236 = smul.u32 14, %s16
        %s237 = ssub.s32 25, %s236
        %p238 = scmp.lt.s32.totalorder %s237, 14
        %s239 = scalar_select %p238, %s237, 14
        %s240 = smul.u32 128, %s239
        %s241 = smul.u32 14, %s16
        %s242 = ssub.s32 25, %s241
        %p243 = scmp.lt.s32.totalorder %s242, 14
        %s244 = scalar_select %p243, %s242, 14
        %s245 = smul.u32 128, %s244
        %v247 = vld [vmem:[%s235] sm:$0xff]
        %v248 = vld [vmem:[%s235 + $0x8] sm:$0xff]
        %v249 = vld [vmem:[%s235 + $0x10] sm:$0xff]
        %v250 = vld [vmem:[%s235 + $0x18] sm:$0xff]
        %v251 = vld [vmem:[%s235 + $0x20] sm:$0xff]
        %v252 = vld [vmem:[%s235 + $0x28] sm:$0xff]
        %v253 = vld [vmem:[%s235 + $0x30] sm:$0xff]
        %v254 = vld [vmem:[%s235 + $0x38] sm:$0xff]
        %v255 = vld [vmem:[%s235 + $0x40] sm:$0xff]
        %v256 = vld [vmem:[%s235 + $0x48] sm:$0xff]
        %v257 = vld [vmem:[%s235 + $0x50] sm:$0xff]
        %v258 = vld [vmem:[%s235 + $0x58] sm:$0xff]
        %v259 = vld [vmem:[%s235 + $0x60] sm:$0xff]
        %v260 = vld [vmem:[%s235 + $0x68] sm:$0xff]
        %v261 = vpack.c.bf16 %v248, %v247
        %v262 = vpack.c.bf16 %v250, %v249
        %v263 = vpack.c.bf16 %v252, %v251
        %v264 = vpack.c.bf16 %v254, %v253
        %v265 = vpack.c.bf16 %v256, %v255
        %v266 = vpack.c.bf16 %v258, %v257
        %v267 = vpack.c.bf16 %v260, %v259
        %v268 = vld [vmem:[%s1] sm:$0xf]
        %v269 = vld [vmem:[%s1 + $0x4] sm:$0xf]
        %v270 = vld [vmem:[%s1 + $0x8] sm:$0xf]
        %v271 = vld [vmem:[%s1 + $0xc] sm:$0xf]
        %v272 = vld [vmem:[%s1 + $0x10] sm:$0xf]
        %v273 = vld [vmem:[%s1 + $0x14] sm:$0xf]
        %v274 = vld [vmem:[%s1 + $0x18] sm:$0xf]
        %v275 = vld [vmem:[%s1 + $0x1c] sm:$0xf]
        %v276 = vld [vmem:[%s2] sm:$0x1]
        %v278 = vlaneseq
        %v279 = vshrl.u32 %v278, 7
        %v280 = vsub.s32 0, %v279
        %v281 = vrot.slane %v276, %v280
        %v291 = vunpack.c.l.b16 %v268
        %v292 = vunpack.c.l.b16 %v269
        %v293 = vunpack.c.l.b16 %v270
        %v294 = vunpack.c.l.b16 %v271
        %v295 = vunpack.c.l.b16 %v272
        %v296 = vunpack.c.l.b16 %v273
        %v297 = vunpack.c.l.b16 %v274
        %v298 = vunpack.c.l.b16 %v275
        %v299 = vpack.c.b16 %v292, %v291
        %v300 = vpack.c.b16 %v294, %v293
        %v301 = vpack.c.b16 %v296, %v295
        %v302 = vpack.c.b16 %v298, %v297
        %vm307 = vcmask 523264
        %v309 = vsel %vm307, %v261, 0
        %v312 = vsel %vm307, %v262, 0
        %v315 = vsel %vm307, %v263, 0
        %v318 = vsel %vm307, %v264, 0
        %v321 = vsel %vm307, %v265, 0
        %v324 = vsel %vm307, %v266, 0
        %v327 = vsel %vm307, %v267, 0
        %329 = vmatprep.subr.bf16.mxu0 0
        %330 = vmatpush1.bf16.msra.mxu0 0
        %331 = vmatprep.subr.bf16.mxu0 0
        %332 = vmatpush1.bf16.msra.mxu0 0
        %333 = vmatprep.subr.bf16.mxu0 0
        %334 = vmatpush1.bf16.msra.mxu0 0
        %335 = vmatprep.subr.bf16.mxu0 0
        %336 = vmatpush1.bf16.msra.mxu0 0
        %337 = vmatprep.subr.bf16.mxu0 0
        %338 = vmatpush1.bf16.msra.mxu0 %v302
        %339 = vmatprep.subr.bf16.mxu0 0
        %340 = vmatpush1.bf16.msra.mxu0 %v301
        %341 = vmatprep.subr.bf16.mxu0 0
        %342 = vmatpush1.bf16.msra.mxu0 %v300
        %343 = vmatprep.subr.bf16.mxu0 0
        %344 = vmatpush1.bf16.msra.mxu0 %v299
        %345 = vmatprep.subr.bf16.mxu0 0
        %346 = vmatpush2.bf16.msra.mxu0 0
        %347 = vmatprep.subr.bf16.mxu0 0
        %348 = vmatpush2.bf16.msra.mxu0 0
        %349 = vmatprep.subr.bf16.mxu0 0
        %350 = vmatpush2.bf16.msra.mxu0 0
        %351 = vmatprep.subr.bf16.mxu0 0
        %352 = vmatpush2.bf16.msra.mxu0 0
        %353 = vmatprep.subr.bf16.mxu0 0
        %354 = vmatpush2.bf16.msra.mxu0 0
        %355 = vmatprep.subr.bf16.mxu0 0
        %356 = vmatpush2.bf16.msra.mxu0 0
        %357 = vmatprep.subr.bf16.mxu0 0
        %358 = vmatpush2.bf16.msra.mxu0 0
        %359 = vmatprep.subr.bf16.mxu0 0
        %360 = vmatpush2.bf16.msra.mxu0 0
        %361 = vmatprep.mubr.bf16.mxu0 0
        %362 = vmatmul.mubr.bf16.gmra.mxu0 %v309
        %v363 = vpop.f32.mrf.mxu0
        %v364 = vadd.f32 %v281, %v363
        %v365 = vpop.f32.mrf.mxu0
        %v366 = vpop.f32.mrf.mxu0
        %v367 = vadd.f32 %v281, %v366
        %v368 = vpop.f32.mrf.mxu0
        %369 = vmatprep.mubr.bf16.mxu0 0
        %370 = vmatmul.mubr.bf16.gmra.mxu0 %v312
        %v371 = vpop.f32.mrf.mxu0
        %v372 = vadd.f32 %v281, %v371
        %v373 = vpop.f32.mrf.mxu0
        %v374 = vpop.f32.mrf.mxu0
        %v375 = vadd.f32 %v281, %v374
        %v376 = vpop.f32.mrf.mxu0
        %377 = vmatprep.mubr.bf16.mxu0 0
        %378 = vmatmul.mubr.bf16.gmra.mxu0 %v315
        %v379 = vpop.f32.mrf.mxu0
        %v380 = vadd.f32 %v281, %v379
        %v381 = vpop.f32.mrf.mxu0
        %v382 = vpop.f32.mrf.mxu0
        %v383 = vadd.f32 %v281, %v382
        %v384 = vpop.f32.mrf.mxu0
        %385 = vmatprep.mubr.bf16.mxu0 0
        %386 = vmatmul.mubr.bf16.gmra.mxu0 %v318
        %v387 = vpop.f32.mrf.mxu0
        %v388 = vadd.f32 %v281, %v387
        %v389 = vpop.f32.mrf.mxu0
        %v390 = vpop.f32.mrf.mxu0
        %v391 = vadd.f32 %v281, %v390
        %v392 = vpop.f32.mrf.mxu0
        %393 = vmatprep.mubr.bf16.mxu0 0
        %394 = vmatmul.mubr.bf16.gmra.mxu0 %v321
        %v395 = vpop.f32.mrf.mxu0
        %v396 = vadd.f32 %v281, %v395
        %v397 = vpop.f32.mrf.mxu0
        %v398 = vpop.f32.mrf.mxu0
        %v399 = vadd.f32 %v281, %v398
        %v400 = vpop.f32.mrf.mxu0
        %401 = vmatprep.mubr.bf16.mxu0 0
        %402 = vmatmul.mubr.bf16.gmra.mxu0 %v324
        %v403 = vpop.f32.mrf.mxu0
        %v404 = vadd.f32 %v281, %v403
        %v405 = vpop.f32.mrf.mxu0
        %v406 = vpop.f32.mrf.mxu0
        %v407 = vadd.f32 %v281, %v406
        %v408 = vpop.f32.mrf.mxu0
        %409 = vmatprep.mubr.bf16.mxu0 0
        %410 = vmatmul.mubr.bf16.gmra.mxu0 %v327
        %v411 = vpop.f32.mrf.mxu0
        %v412 = vadd.f32 %v281, %v411
        %v413 = vpop.f32.mrf.mxu0
        %v414 = vpop.f32.mrf.mxu0
        %v415 = vadd.f32 %v281, %v414
        %v416 = vpop.f32.mrf.mxu0
        %417 = vdwg.mxu0
        %v418 = vmax.f32 %v364, 0.0
        %v419 = vmax.f32 %v367, 0.0
        %v420 = vmax.f32 %v372, 0.0
        %v421 = vmax.f32 %v375, 0.0
        %v422 = vmax.f32 %v380, 0.0
        %v423 = vmax.f32 %v383, 0.0
        %v424 = vmax.f32 %v388, 0.0
        %v425 = vmax.f32 %v391, 0.0
        %v426 = vmax.f32 %v396, 0.0
        %v427 = vmax.f32 %v399, 0.0
        %v428 = vmax.f32 %v404, 0.0
        %v429 = vmax.f32 %v407, 0.0
        %v430 = vmax.f32 %v412, 0.0
        %v431 = vmax.f32 %v415, 0.0
        %v432 = vpack.c.bf16 %v419, %v418
        %v433 = vpack.c.bf16 %v421, %v420
        %v434 = vpack.c.bf16 %v423, %v422
        %v435 = vpack.c.bf16 %v425, %v424
        %v436 = vpack.c.bf16 %v427, %v426
        %v437 = vpack.c.bf16 %v429, %v428
        %v438 = vpack.c.bf16 %v431, %v430
        %v439 = vld [vmem:[%s3] sm:$0xf]
        %v440 = vld [vmem:[%s3 + $0x4] sm:$0xf]
        %v441 = vld [vmem:[%s3 + $0x8] sm:$0xf]
        %v442 = vld [vmem:[%s3 + $0xc] sm:$0xf]
        %v443 = vld [vmem:[%s3 + $0x10] sm:$0xf]
        %v444 = vld [vmem:[%s3 + $0x14] sm:$0xf]
        %v445 = vld [vmem:[%s3 + $0x18] sm:$0xf]
        %v446 = vld [vmem:[%s3 + $0x1c] sm:$0xf]
        %v447 = vld [vmem:[%s3 + $0x20] sm:$0xf]
        %v448 = vld [vmem:[%s3 + $0x24] sm:$0xf]
        %v449 = vld [vmem:[%s3 + $0x28] sm:$0xf]
        %v450 = vld [vmem:[%s3 + $0x2c] sm:$0xf]
        %v451 = vld [vmem:[%s3 + $0x30] sm:$0xf]
        %v452 = vld [vmem:[%s3 + $0x34] sm:$0xf]
        %v453 = vld [vmem:[%s3 + $0x38] sm:$0xf]
        %v454 = vld [vmem:[%s3 + $0x3c] sm:$0xf]
        %v455 = vld [vmem:[%s4] sm:$0x1]
        %v457 = vlaneseq
        %v458 = vshrl.u32 %v457, 7
        %v459 = vsub.s32 0, %v458
        %v460 = vrot.slane %v455, %v459
        %v478 = vunpack.c.l.b16 %v439
        %v479 = vunpack.c.l.b16 %v440
        %v480 = vunpack.c.l.b16 %v441
        %v481 = vunpack.c.l.b16 %v442
        %v482 = vunpack.c.l.b16 %v443
        %v483 = vunpack.c.l.b16 %v444
        %v484 = vunpack.c.l.b16 %v445
        %v485 = vunpack.c.l.b16 %v446
        %v486 = vunpack.c.l.b16 %v447
        %v487 = vunpack.c.l.b16 %v448
        %v488 = vunpack.c.l.b16 %v449
        %v489 = vunpack.c.l.b16 %v450
        %v490 = vunpack.c.l.b16 %v451
        %v491 = vunpack.c.l.b16 %v452
        %v492 = vunpack.c.l.b16 %v453
        %v493 = vunpack.c.l.b16 %v454
        %v494 = vpack.c.b16 %v479, %v478
        %v495 = vpack.c.b16 %v481, %v480
        %v496 = vpack.c.b16 %v483, %v482
        %v497 = vpack.c.b16 %v485, %v484
        %v498 = vpack.c.b16 %v487, %v486
        %v499 = vpack.c.b16 %v489, %v488
        %v500 = vpack.c.b16 %v491, %v490
        %v501 = vpack.c.b16 %v493, %v492
        %510 = vmatprep.subr.bf16.mxu0 0
        %511 = vmatpush1.bf16.msra.mxu0 %v501
        %512 = vmatprep.subr.bf16.mxu0 0
        %513 = vmatpush1.bf16.msra.mxu0 %v500
        %514 = vmatprep.subr.bf16.mxu0 0
        %515 = vmatpush1.bf16.msra.mxu0 %v499
        %516 = vmatprep.subr.bf16.mxu0 0
        %517 = vmatpush1.bf16.msra.mxu0 %v498
        %518 = vmatprep.subr.bf16.mxu0 0
        %519 = vmatpush1.bf16.msra.mxu0 %v497
        %520 = vmatprep.subr.bf16.mxu0 0
        %521 = vmatpush1.bf16.msra.mxu0 %v496
        %522 = vmatprep.subr.bf16.mxu0 0
        %523 = vmatpush1.bf16.msra.mxu0 %v495
        %524 = vmatprep.subr.bf16.mxu0 0
        %525 = vmatpush1.bf16.msra.mxu0 %v494
        %526 = vmatprep.subr.bf16.mxu0 0
        %527 = vmatpush2.bf16.msra.mxu0 0
        %528 = vmatprep.subr.bf16.mxu0 0
        %529 = vmatpush2.bf16.msra.mxu0 0
        %530 = vmatprep.subr.bf16.mxu0 0
        %531 = vmatpush2.bf16.msra.mxu0 0
        %532 = vmatprep.subr.bf16.mxu0 0
        %533 = vmatpush2.bf16.msra.mxu0 0
        %534 = vmatprep.subr.bf16.mxu0 0
        %535 = vmatpush2.bf16.msra.mxu0 0
        %536 = vmatprep.subr.bf16.mxu0 0
        %537 = vmatpush2.bf16.msra.mxu0 0
        %538 = vmatprep.subr.bf16.mxu0 0
        %539 = vmatpush2.bf16.msra.mxu0 0
        %540 = vmatprep.subr.bf16.mxu0 0
        %541 = vmatpush2.bf16.msra.mxu0 0
        %542 = vmatprep.mubr.bf16.mxu0 0
        %543 = vmatmul.mubr.bf16.gmra.mxu0 %v432
        %v544 = vpop.f32.mrf.mxu0
        %v545 = vadd.f32 %v460, %v544
        %v546 = vpop.f32.mrf.mxu0
        %v547 = vpop.f32.mrf.mxu0
        %v548 = vadd.f32 %v460, %v547
        %v549 = vpop.f32.mrf.mxu0
        %550 = vmatprep.mubr.bf16.mxu0 0
        %551 = vmatmul.mubr.bf16.gmra.mxu0 %v433
        %v552 = vpop.f32.mrf.mxu0
        %v553 = vadd.f32 %v460, %v552
        %v554 = vpop.f32.mrf.mxu0
        %v555 = vpop.f32.mrf.mxu0
        %v556 = vadd.f32 %v460, %v555
        %v557 = vpop.f32.mrf.mxu0
        %558 = vmatprep.mubr.bf16.mxu0 0
        %559 = vmatmul.mubr.bf16.gmra.mxu0 %v434
        %v560 = vpop.f32.mrf.mxu0
        %v561 = vadd.f32 %v460, %v560
        %v562 = vpop.f32.mrf.mxu0
        %v563 = vpop.f32.mrf.mxu0
        %v564 = vadd.f32 %v460, %v563
        %v565 = vpop.f32.mrf.mxu0
        %566 = vmatprep.mubr.bf16.mxu0 0
        %567 = vmatmul.mubr.bf16.gmra.mxu0 %v435
        %v568 = vpop.f32.mrf.mxu0
        %v569 = vadd.f32 %v460, %v568
        %v570 = vpop.f32.mrf.mxu0
        %v571 = vpop.f32.mrf.mxu0
        %v572 = vadd.f32 %v460, %v571
        %v573 = vpop.f32.mrf.mxu0
        %574 = vmatprep.mubr.bf16.mxu0 0
        %575 = vmatmul.mubr.bf16.gmra.mxu0 %v436
        %v576 = vpop.f32.mrf.mxu0
        %v577 = vadd.f32 %v460, %v576
        %v578 = vpop.f32.mrf.mxu0
        %v579 = vpop.f32.mrf.mxu0
        %v580 = vadd.f32 %v460, %v579
        %v581 = vpop.f32.mrf.mxu0
        %582 = vmatprep.mubr.bf16.mxu0 0
        %583 = vmatmul.mubr.bf16.gmra.mxu0 %v437
        %v584 = vpop.f32.mrf.mxu0
        %v585 = vadd.f32 %v460, %v584
        %v586 = vpop.f32.mrf.mxu0
        %v587 = vpop.f32.mrf.mxu0
        %v588 = vadd.f32 %v460, %v587
        %v589 = vpop.f32.mrf.mxu0
        %590 = vmatprep.mubr.bf16.mxu0 0
        %591 = vmatmul.mubr.bf16.gmra.mxu0 %v438
        %v592 = vpop.f32.mrf.mxu0
        %v593 = vadd.f32 %v460, %v592
        %v594 = vpop.f32.mrf.mxu0
        %v595 = vpop.f32.mrf.mxu0
        %v596 = vadd.f32 %v460, %v595
        %v597 = vpop.f32.mrf.mxu0
        %598 = vdwg.mxu0
        %vm599 = vcmask 15360
        %600 = vst.msk [vmem:[%s226] sm:$0xff] %vm599, %v545
        %601 = vst.msk [vmem:[%s226 + $0x8] sm:$0xff] %vm599, %v548
        %602 = vst.msk [vmem:[%s226 + $0x10] sm:$0xff] %vm599, %v553
        %603 = vst.msk [vmem:[%s226 + $0x18] sm:$0xff] %vm599, %v556
        %604 = vst.msk [vmem:[%s226 + $0x20] sm:$0xff] %vm599, %v561
        %605 = vst.msk [vmem:[%s226 + $0x28] sm:$0xff] %vm599, %v564
        %606 = vst.msk [vmem:[%s226 + $0x30] sm:$0xff] %vm599, %v569
        %607 = vst.msk [vmem:[%s226 + $0x38] sm:$0xff] %vm599, %v572
        %608 = vst.msk [vmem:[%s226 + $0x40] sm:$0xff] %vm599, %v577
        %609 = vst.msk [vmem:[%s226 + $0x48] sm:$0xff] %vm599, %v580
        %610 = vst.msk [vmem:[%s226 + $0x50] sm:$0xff] %vm599, %v585
        %611 = vst.msk [vmem:[%s226 + $0x58] sm:$0xff] %vm599, %v588
        %612 = vst.msk [vmem:[%s226 + $0x60] sm:$0xff] %vm599, %v593
        %613 = vst.msk [vmem:[%s226 + $0x68] sm:$0xff] %vm599, %v596
        %s614 = sand.u32 %s134, 1
        %s615 = sand.u32 %s134, 1
        %s616 = smul.addr %s615, 112
        %s617 = scalar_lea.vmem [#allocation2], %s616
        // Predicated region
        $region41: #{mlp_forward.1} parent=39 // pred_check
          %p618 = pneg %p144
        $region42: #{mlp_forward.1} parent=39 // pred_check_branch
          %620 = sbr.rel (%p618) target = $region44
        $region43: #{mlp_forward.1} parent=39 // pred_region
          %s621 = smul.u32 14, %s16
          %s622 = ssub.s32 25, %s621
          %p623 = scmp.lt.s32.totalorder %s622, 14
          %s624 = scalar_select %p623, %s622, 14
          %s625 = smul.u32 128, %s624
          %p626 = scmp.ne.s32.totalorder 0, %s625
          %s627 = smul.addr %s621, 8
          %s628 = scalar_lea.vmem %s5, %s627
          // Predicated region
          $region45: #{mlp_forward.1} parent=43 // pred_check
            %p629 = pneg %p626
          $region46: #{mlp_forward.1} parent=43 // pred_check_branch
            %631 = sbr.rel (%p629) target = $region48
          $region47: #{mlp_forward.1} parent=43 // pred_region
            // Predicated region
            $region49: #{mlp_forward.1} parent=47 // pred_check
              _
            $region50: #{mlp_forward.1} parent=47 // pred_check_branch
              %633 = sbr.rel (0) target = $region52
            $region51: #{mlp_forward.1} parent=47 // pred_region
              // Predicated region
              $region71: #{mlp_forward.1} parent=51 // pred_check
                _
              $region72: #{mlp_forward.1} parent=51 // pred_check_branch
                %710 = sbr.rel (0) target = $region74
              $region73: #{mlp_forward.1} parent=51 // pred_region
                %s711 = sdiv.u32.pop %s624, 14
                %s712 = srem.u32.pop %s624, 14
                // While loop
                $region75: #{mlp_forward.1} parent=73 // loop_pre_header
                  _
                $region76: #{mlp_forward.1} parent=73 // loop_header
                  %s714 = sphi 0, %s716
                  %p715 = scmp.ge.s32.totalorder %s714, %s711
                  %s719 = sphi 0, %s752
                  %s720 = sphi %s617, %s755
                  %s721 = sphi %s628, %s756
                $region77: #{mlp_forward.1} parent=73 // loop_header_branch
                  %718 = sbr.rel (%p715) target = $region81
                $region78: #{mlp_forward.1} parent=73 // loop_body
                  %v722 = vld [vmem:[%s720] sm:$0xff]
                  %723 = vst [vmem:[%s721] sm:$0xff] %v722
                  %v724 = vld [vmem:[%s720 + $0x8] sm:$0xff]
                  %725 = vst [vmem:[%s721 + $0x8] sm:$0xff] %v724
                  %v726 = vld [vmem:[%s720 + $0x10] sm:$0xff]
                  %727 = vst [vmem:[%s721 + $0x10] sm:$0xff] %v726
                  %v728 = vld [vmem:[%s720 + $0x18] sm:$0xff]
                  %729 = vst [vmem:[%s721 + $0x18] sm:$0xff] %v728
                  %v730 = vld [vmem:[%s720 + $0x20] sm:$0xff]
                  %731 = vst [vmem:[%s721 + $0x20] sm:$0xff] %v730
                  %v732 = vld [vmem:[%s720 + $0x28] sm:$0xff]
                  %733 = vst [vmem:[%s721 + $0x28] sm:$0xff] %v732
                  %v734 = vld [vmem:[%s720 + $0x30] sm:$0xff]
                  %735 = vst [vmem:[%s721 + $0x30] sm:$0xff] %v734
                  %v736 = vld [vmem:[%s720 + $0x38] sm:$0xff]
                  %737 = vst [vmem:[%s721 + $0x38] sm:$0xff] %v736
                  %v738 = vld [vmem:[%s720 + $0x40] sm:$0xff]
                  %739 = vst [vmem:[%s721 + $0x40] sm:$0xff] %v738
                  %v740 = vld [vmem:[%s720 + $0x48] sm:$0xff]
                  %741 = vst [vmem:[%s721 + $0x48] sm:$0xff] %v740
                  %v742 = vld [vmem:[%s720 + $0x50] sm:$0xff]
                  %743 = vst [vmem:[%s721 + $0x50] sm:$0xff] %v742
                  %v744 = vld [vmem:[%s720 + $0x58] sm:$0xff]
                  %745 = vst [vmem:[%s721 + $0x58] sm:$0xff] %v744
                  %v746 = vld [vmem:[%s720 + $0x60] sm:$0xff]
                  %747 = vst [vmem:[%s721 + $0x60] sm:$0xff] %v746
                  %v748 = vld [vmem:[%s720 + $0x68] sm:$0xff]
                  %749 = vst [vmem:[%s721 + $0x68] sm:$0xff] %v748
                  %s750 = sadd.s32 1, %s719
                  %p751 = scmp.ge.s32.totalorder %s750, %s711
                  %s752 = scalar_select %p751, 0, %s750
                  %s753 = smul.u32 %s752, 112
                  %s754 = smul.u32 %s752, 112
                  %s755 = scalar_lea.vmem %s617, %s753 [#allocation2]
                  %s756 = scalar_lea.vmem %s628, %s754
                $region79: #{mlp_forward.1} parent=73 // loop_footer
                  %s716 = sadd.s32 %s714, 1
                $region80: #{mlp_forward.1} parent=73 // loop_footer_branch
                  %713 = sbr.rel target = $region76
                $region81: #{mlp_forward.1} parent=73 // loop_exit
                  _
                %s757 = sdiv.u32.pop %s624, 14
                %s758 = srem.u32.pop %s624, 14
                %s759 = smul.u32 %s757, 14
                %s760 = smul.u32 8, %s759
                %s761 = scalar_lea.vmem %s617, %s760 [#allocation2]
                %s762 = smul.u32 8, %s759
                %s763 = scalar_lea.vmem %s628, %s762
                // While loop
                $region82: #{mlp_forward.1} parent=73 // loop_pre_header
                  _
                $region83: #{mlp_forward.1} parent=73 // loop_header
                  %s765 = sphi 0, %s767
                  %p766 = scmp.ge.s32.totalorder %s765, %s758
                  %s770 = sphi 0, %s777
                  %s771 = sphi %s761, %s780
                  %s772 = sphi %s763, %s781
                $region84: #{mlp_forward.1} parent=73 // loop_header_branch
                  %769 = sbr.rel (%p766) target = $region88
                $region85: #{mlp_forward.1} parent=73 // loop_body
                  %v773 = vld [vmem:[%s771] sm:$0xff]
                  %774 = vst [vmem:[%s772] sm:$0xff] %v773
                  %s775 = sadd.s32 1, %s770
                  %p776 = scmp.ge.s32.totalorder %s775, %s758
                  %s777 = scalar_select %p776, 0, %s775
                  %s778 = smul.u32 %s777, 8
                  %s779 = smul.u32 %s777, 8
                  %s780 = scalar_lea.vmem %s761, %s778 [#allocation2]
                  %s781 = scalar_lea.vmem %s763, %s779
                $region86: #{mlp_forward.1} parent=73 // loop_footer
                  %s767 = sadd.s32 %s765, 1
                $region87: #{mlp_forward.1} parent=73 // loop_footer_branch
                  %764 = sbr.rel target = $region83
                $region88: #{mlp_forward.1} parent=73 // loop_exit
                  _
              $region74: #{mlp_forward.1} parent=51 // pred_fallthru
                _
              // Predicated region
              $region89: #{mlp_forward.1} parent=51 // pred_check
                _
              $region90: #{mlp_forward.1} parent=51 // pred_check_branch
                %783 = sbr.rel target = $region92
              $region91: #{mlp_forward.1} parent=51 // pred_region
                _
              $region92: #{mlp_forward.1} parent=51 // pred_fallthru
                _
            $region52: #{mlp_forward.1} parent=47 // pred_fallthru
              _
            // Predicated region
            $region53: #{mlp_forward.1} parent=47 // pred_check
              _
            $region54: #{mlp_forward.1} parent=47 // pred_check_branch
              %635 = sbr.rel target = $region56
            $region55: #{mlp_forward.1} parent=47 // pred_region
              %s637 = ssub.s32 256, 1
              %s638 = sdiv.u32.pop %s624, 14
              %s639 = srem.u32.pop %s624, 14
              // While loop
              $region57: #{mlp_forward.1} parent=55 // loop_pre_header
                _
              $region58: #{mlp_forward.1} parent=55 // loop_header
                %s641 = sphi 0, %s643
                %p642 = scmp.ge.s32.totalorder %s641, %s638
                %s646 = sphi 0, %s679
                %s647 = sphi %s617, %s682
                %s648 = sphi %s628, %s683
              $region59: #{mlp_forward.1} parent=55 // loop_header_branch
                %645 = sbr.rel (%p642) target = $region63
              $region60: #{mlp_forward.1} parent=55 // loop_body
                %v649 = vld [vmem:[%s647] sm:%s637]
                %650 = vst [vmem:[%s648] sm:%s637] %v649
                %v651 = vld [vmem:[%s647 + $0x8] sm:%s637]
                %652 = vst [vmem:[%s648 + $0x8] sm:%s637] %v651
                %v653 = vld [vmem:[%s647 + $0x10] sm:%s637]
                %654 = vst [vmem:[%s648 + $0x10] sm:%s637] %v653
                %v655 = vld [vmem:[%s647 + $0x18] sm:%s637]
                %656 = vst [vmem:[%s648 + $0x18] sm:%s637] %v655
                %v657 = vld [vmem:[%s647 + $0x20] sm:%s637]
                %658 = vst [vmem:[%s648 + $0x20] sm:%s637] %v657
                %v659 = vld [vmem:[%s647 + $0x28] sm:%s637]
                %660 = vst [vmem:[%s648 + $0x28] sm:%s637] %v659
                %v661 = vld [vmem:[%s647 + $0x30] sm:%s637]
                %662 = vst [vmem:[%s648 + $0x30] sm:%s637] %v661
                %v663 = vld [vmem:[%s647 + $0x38] sm:%s637]
                %664 = vst [vmem:[%s648 + $0x38] sm:%s637] %v663
                %v665 = vld [vmem:[%s647 + $0x40] sm:%s637]
                %666 = vst [vmem:[%s648 + $0x40] sm:%s637] %v665
                %v667 = vld [vmem:[%s647 + $0x48] sm:%s637]
                %668 = vst [vmem:[%s648 + $0x48] sm:%s637] %v667
                %v669 = vld [vmem:[%s647 + $0x50] sm:%s637]
                %670 = vst [vmem:[%s648 + $0x50] sm:%s637] %v669
                %v671 = vld [vmem:[%s647 + $0x58] sm:%s637]
                %672 = vst [vmem:[%s648 + $0x58] sm:%s637] %v671
                %v673 = vld [vmem:[%s647 + $0x60] sm:%s637]
                %674 = vst [vmem:[%s648 + $0x60] sm:%s637] %v673
                %v675 = vld [vmem:[%s647 + $0x68] sm:%s637]
                %676 = vst [vmem:[%s648 + $0x68] sm:%s637] %v675
                %s677 = sadd.s32 1, %s646
                %p678 = scmp.ge.s32.totalorder %s677, %s638
                %s679 = scalar_select %p678, 0, %s677
                %s680 = smul.u32 %s679, 112
                %s681 = smul.u32 %s679, 112
                %s682 = scalar_lea.vmem %s617, %s680 [#allocation2]
                %s683 = scalar_lea.vmem %s628, %s681
              $region61: #{mlp_forward.1} parent=55 // loop_footer
                %s643 = sadd.s32 %s641, 1
              $region62: #{mlp_forward.1} parent=55 // loop_footer_branch
                %640 = sbr.rel target = $region58
              $region63: #{mlp_forward.1} parent=55 // loop_exit
                _
              %s684 = sdiv.u32.pop %s624, 14
              %s685 = srem.u32.pop %s624, 14
              %s686 = smul.u32 %s684, 14
              %s687 = smul.u32 8, %s686
              %s688 = scalar_lea.vmem %s617, %s687 [#allocation2]
              %s689 = smul.u32 8, %s686
              %s690 = scalar_lea.vmem %s628, %s689
              // While loop
              $region64: #{mlp_forward.1} parent=55 // loop_pre_header
                _
              $region65: #{mlp_forward.1} parent=55 // loop_header
                %s692 = sphi 0, %s694
                %p693 = scmp.ge.s32.totalorder %s692, %s685
                %s697 = sphi 0, %s704
                %s698 = sphi %s688, %s707
                %s699 = sphi %s690, %s708
              $region66: #{mlp_forward.1} parent=55 // loop_header_branch
                %696 = sbr.rel (%p693) target = $region70
              $region67: #{mlp_forward.1} parent=55 // loop_body
                %v700 = vld [vmem:[%s698] sm:%s637]
                %701 = vst [vmem:[%s699] sm:%s637] %v700
                %s702 = sadd.s32 1, %s697
                %p703 = scmp.ge.s32.totalorder %s702, %s685
                %s704 = scalar_select %p703, 0, %s702
                %s705 = smul.u32 %s704, 8
                %s706 = smul.u32 %s704, 8
                %s707 = scalar_lea.vmem %s688, %s705 [#allocation2]
                %s708 = scalar_lea.vmem %s690, %s706
              $region68: #{mlp_forward.1} parent=55 // loop_footer
                %s694 = sadd.s32 %s692, 1
              $region69: #{mlp_forward.1} parent=55 // loop_footer_branch
                %691 = sbr.rel target = $region65
              $region70: #{mlp_forward.1} parent=55 // loop_exit
                _
            $region56: #{mlp_forward.1} parent=47 // pred_fallthru
              _
          $region48: #{mlp_forward.1} parent=43 // pred_fallthru
            _
          %784 = vnop
        $region44: #{mlp_forward.1} parent=39 // pred_fallthru
          _
      $region40: #{mlp_forward.1} parent=5 // pred_fallthru
        _
      %p785 = scmp.le.s32.totalorder 2, %s11
      // Predicated region
      $region93: #{mlp_forward.1} parent=5 // pred_check
        %p786 = pneg %p785
      $region94: #{mlp_forward.1} parent=5 // pred_check_branch
        %788 = sbr.rel (%p786) target = $region96
      $region95: #{mlp_forward.1} parent=5 // pred_region
        %s789 = ssub.s32 %s11, 2
        // Predicated region
        $region97: #{mlp_forward.1} parent=95 // pred_check
          %p790 = pneg %p150
        $region98: #{mlp_forward.1} parent=95 // pred_check_branch
          %792 = sbr.rel (%p790) target = $region100
        $region99: #{mlp_forward.1} parent=95 // pred_region
          %s793 = sand.u32 %s135, 1
          %s794 = sand.u32 %s135, 1
          %s795 = smul.addr %s794, 112
          %s796 = scalar_lea.vmem [#allocation2], %s795
        $region100: #{mlp_forward.1} parent=95 // pred_fallthru
          _
      $region96: #{mlp_forward.1} parent=5 // pred_fallthru
        _
    $region6: #{mlp_forward.1} parent=1 // loop_footer
      %s15 = sadd.s32 1, %s11
    $region7: #{mlp_forward.1} parent=1 // loop_footer_branch
      %10 = sbr.rel target = $region3
    $region8: #{mlp_forward.1} parent=1 // loop_exit
      _

</llo_original>
